<compile_context>
chip_gen: v5e
topology: v5e:2x2
jax: 0.10.0
libtpu: 0.0.40
codegen_flags: <defaults>
</compile_context>

<pallas_src>
import math
import numpy as np
import jax
import jax.numpy as jnp
from jax.experimental import pallas as pl
from jax.experimental.pallas import tpu as pltpu

KIN = 16          # padded input lane width (9 pixels + 1 bias column + pad)
KP = 128          # hidden lane width (40 conv feats / 20 fc1 feats + bias lane + pad)
NOUT = 8          # padded output lane width (2 logits + pad)
MAX_TILE_B = 512  # batch tile height (sweet spot for HBM roofline; sweep 256-1024)

# Constant placement tensor mapping conv1 weights -> im2col matrix entries.
# Depends only on geometry (2x2 kernel over a 3x3 image), built once at import.
_P1_np = np.zeros((9, 2, 2, 2, 2), np.float32)  # [in_pixel, out_h, out_w, kh, kw]
for _h in range(2):
    for _w in range(2):
        for _i in range(2):
            for _j in range(2):
                _P1_np[3 * (_h + _i) + (_w + _j), _h, _w, _i, _j] = 1.0
_P1 = jnp.asarray(_P1_np)


def _round_up(n, m):
    return ((n + m - 1) // m) * m


# --------------------------------- kernel ------------------------------------
def cnn_kernel(x_ref, wc_ref, w1_ref, w2_ref, out_ref):
    """Whole forward pass on one (tile_b, 16) batch tile, weights resident."""
    # Biases are folded into the weights via the constant-1 input column
    # (relu(1) == 1 carries the constant through both activations).
    h0 = jnp.maximum(
        jnp.dot(x_ref[...], wc_ref[...], preferred_element_type=jnp.float32), 0.0)
    h1 = jnp.maximum(
        jnp.dot(h0, w1_ref[...], preferred_element_type=jnp.float32), 0.0)
    out_ref[...] = jnp.dot(
        h1, w2_ref[...], preferred_element_type=jnp.float32).astype(out_ref.dtype)


# -------------------- one-time parameter preparation --------------------------
def prepare_padded_weights(params):
    """Conv-as-matmul construction + bias folding + lane padding.

    Trace-safe (pure jnp ops on the params) but intended to be called ONCE at
    init / load time, not per forward call.
    """
    conv1_w, conv1_b, conv2_w, conv2_b, fc1_w, fc1_b, fc2_w, fc2_b = params
    f32 = jnp.float32

    # conv1: 3x3 -> 2x2 (8 ch); PyTorch .view flatten order is c*4 + h*2 + w.
    wc1 = jnp.einsum("phwij,cij->pchw", _P1, conv1_w[:, 0].astype(f32)).reshape(9, 32)
    # conv2: 3x3 -> 1x1 (8 ch); flatten order is just the channel index.
    wc2 = conv2_w.reshape(8, 9).T.astype(f32)                       # (9, 8)
    wconv = jnp.concatenate([wc1, wc2], axis=1)                     # (9, 40)
    bconv = jnp.concatenate(
        [jnp.repeat(conv1_b.astype(f32), 4), conv2_b.astype(f32)])  # (40,)

    # Bias folding layout:
    #   x column 9 == 1.0 (constant)
    #   Wconv (16,128): rows 0:9 weights, row 9 = conv biases, [9, 40] = 1
    #   W1    (128,128): rows 0:40 fc1_w.T, row 40 = fc1 bias,  [40, 20] = 1
    #   W2    (128,  8): rows 0:20 fc2_w.T, row 20 = fc2 bias
    wc_p = jnp.zeros((KIN, KP), f32)
    wc_p = wc_p.at[:9, :40].set(wconv).at[9, :40].set(bconv).at[9, 40].set(1.0)

    w1_p = jnp.zeros((KP, KP), f32)
    w1_p = (w1_p.at[:40, :20].set(fc1_w.T.astype(f32))
                 .at[40, :20].set(fc1_b.astype(f32))
                 .at[40, 20].set(1.0))

    w2_p = jnp.zeros((KP, NOUT), f32)
    w2_p = (w2_p.at[:20, :2].set(fc2_w.T.astype(f32))
                 .at[20, :2].set(fc2_b.astype(f32)))

    return wc_p, w1_p, w2_p


# ------------------------------ jitted forward --------------------------------
@jax.jit
def _forward_padded(x_nchw, wc_p, w1_p, w2_p):
    B = x_nchw.shape[0]

    # Batch tiling: large tiles to hit the HBM roofline and amortize per-step
    # overhead, but always >= 2 grid steps for B > 16 so the "parallel" axis
    # can shard across both TensorCores on megacore parts (v7x).
    if B <= 16:
        tile_b = 8
    else:
        n_tiles = max(2, -(-B // MAX_TILE_B))
        tile_b = min(MAX_TILE_B, max(8, _round_up(-(-B // n_tiles), 8)))
    bp = _round_up(B, tile_b)
    grid = (bp // tile_b,)

    # Slim input: 9 pixels + constant-1 bias column, padded to 16 lanes.
    x_flat = x_nchw.reshape(B, 9).astype(jnp.float32)
    x_aug = jnp.concatenate([x_flat, jnp.ones((B, 1), jnp.float32)], axis=1)  # (B,10)
    x_p = jnp.pad(x_aug, ((0, bp - B), (0, KIN - 10)))                        # (bp,16)

    cost = pl.CostEstimate(
        flops=2 * bp * (KIN * KP + KP * KP + KP * NOUT),
        transcendentals=0,
        bytes_accessed=4 * (bp * KIN + bp * NOUT
                            + KIN * KP + KP * KP + KP * NOUT),
    )

    out_p = pl.pallas_call(
        cnn_kernel,
        out_shape=jax.ShapeDtypeStruct((bp, NOUT), jnp.float32),
        grid=grid,
        in_specs=[
            pl.BlockSpec((tile_b, KIN), lambda i: (i, 0)),   # x: streamed over batch
            pl.BlockSpec((KIN, KP), lambda i: (0, 0)),       # weights: VMEM-resident
            pl.BlockSpec((KP, KP), lambda i: (0, 0)),
            pl.BlockSpec((KP, NOUT), lambda i: (0, 0)),
        ],
        out_specs=pl.BlockSpec((tile_b, NOUT), lambda i: (i, 0)),
        compiler_params=pltpu.CompilerParams(
            dimension_semantics=("parallel",)),
        cost_estimate=cost,
    )(x_p, wc_p, w1_p, w2_p)

    return out_p[:B, :2]


def cnn_forward_pallas(x_nchw, padded_weights):
    """x_nchw: (B, 1, 3, 3) float32 -> (B, 2) float32."""
    assert x_nchw.shape[1:] == (1, 3, 3)
    return _forward_padded(x_nchw, *padded_weights)


# ----------------------- deterministic parameter init -------------------------
def xavier_uniform(key, shape, fan_in, fan_out):
    bound = math.sqrt(6.0 / (fan_in + fan_out))
    return jax.random.uniform(key, shape, jnp.float32, -bound, bound)


def init_params(key):
    k1, k2, k3, k4 = jax.random.split(key, 4)
    conv1_w = xavier_uniform(k1, (8, 1, 2, 2), fan_in=1 * 2 * 2, fan_out=8 * 2 * 2)
    conv1_b = jnp.zeros((8,), jnp.float32)
    conv2_w = xavier_uniform(k2, (8, 1, 3, 3), fan_in=1 * 3 * 3, fan_out=8 * 3 * 3)
    conv2_b = jnp.zeros((8,), jnp.float32)
    fc1_w = xavier_uniform(k3, (20, 40), fan_in=40, fan_out=20)
    fc1_b = jnp.zeros((20,), jnp.float32)
    fc2_w = xavier_uniform(k4, (2, 20), fan_in=20, fan_out=2)
    fc2_b = jnp.zeros((2,), jnp.float32)
    return conv1_w, conv1_b, conv2_w, conv2_b, fc1_w, fc1_b, fc2_w, fc2_b


# --------------------------- pure-JAX reference check --------------------------
def reference_forward(x, params):
    conv1_w, conv1_b, conv2_w, conv2_b, fc1_w, fc1_b, fc2_w, fc2_b = params
    dn = ("NCHW", "OIHW", "NCHW")
    y1 = jax.lax.conv_general_dilated(x, conv1_w, (1, 1), "VALID", dimension_numbers=dn)
    y1 = y1 + conv1_b[None, :, None, None]
    x1 = jax.nn.relu(y1).reshape(x.shape[0], -1)
    y2 = jax.lax.conv_general_dilated(x, conv2_w, (1, 1), "VALID", dimension_numbers=dn)
    y2 = y2 + conv2_b[None, :, None, None]
    x2 = jax.nn.relu(y2).reshape(x.shape[0], -1)
    xc = jnp.concatenate([x1, x2], axis=1)
    h = jax.nn.relu(xc @ fc1_w.T + fc1_b)
    return h @ fc2_w.T + fc2_b


if __name__ == "__main__":
    key = jax.random.PRNGKey(0)
    k_x, k_p, k_b1, k_b2, k_xl = jax.random.split(key, 5)
    params = init_params(k_p)

    # ---- small check (B=2), zero biases as in the module's init ----
    B = 2
    x = jax.random.normal(k_x, (B, 1, 3, 3), jnp.float32)  # 3x3 forced by fc1 in_features=40
    padded = prepare_padded_weights(params)                 # one-time parameter glue
    out = jax.block_until_ready(cnn_forward_pallas(x, padded))
    ref = reference_forward(x, params)
    np.testing.assert_allclose(np.asarray(out), np.asarray(ref), rtol=1e-5, atol=1e-5)

    # ---- batched check (B=300 -> 2-step parallel grid) with nonzero biases
    #      to exercise the batch tiling and the bias folding ----
    p = list(params)
    p[1] = 0.1 * jax.random.normal(k_b1, (8,), jnp.float32)   # conv1 bias
    p[5] = 0.1 * jax.random.normal(k_b2, (20,), jnp.float32)  # fc1 bias
    params_b = tuple(p)
    xl = jax.random.normal(k_xl, (300, 1, 3, 3), jnp.float32)
    padded_b = prepare_padded_weights(params_b)
    out_b = jax.block_until_ready(cnn_forward_pallas(xl, padded_b))
    ref_b = reference_forward(xl, params_b)
    np.testing.assert_allclose(np.asarray(out_b), np.asarray(ref_b), rtol=1e-5, atol=1e-5)

    print("KERNEL_OK")
</pallas_src>

<mosaic_0001>
module attributes {stable_mosaic.version = 11 : i64} {
  func.func @cnn_kernel(%arg0: i32, %arg1: memref<8x16xf32, #tpu.memory_space<vmem>>, %arg2: memref<16x128xf32, #tpu.memory_space<vmem>>, %arg3: memref<128x128xf32, #tpu.memory_space<vmem>>, %arg4: memref<128x8xf32, #tpu.memory_space<vmem>>, %arg5: memref<8x8xf32, #tpu.memory_space<vmem>>) attributes {dimension_semantics = [#tpu.dimension_semantics<parallel>], iteration_bounds = array<i64: 1>, scalar_prefetch = 0 : i64, scratch_operands = 0 : i64, tpu.core_type = #tpu.core_type<tc>, window_params = [{transform_indices = @transform_0, window_bounds = array<i64: 8, 16>}, {pipeline_mode = #tpu.pipeline_mode<synchronous>, transform_indices = @transform_1, window_bounds = array<i64: 16, 128>}, {pipeline_mode = #tpu.pipeline_mode<synchronous>, transform_indices = @transform_2, window_bounds = array<i64: 128, 128>}, {pipeline_mode = #tpu.pipeline_mode<synchronous>, transform_indices = @transform_3, window_bounds = array<i64: 128, 8>}, {transform_indices = @transform_4, window_bounds = array<i64: 8, 8>}]} {
    %c0 = arith.constant 0 : index
    %c0_0 = arith.constant 0 : index
    %0 = vector.load %arg1[%c0, %c0_0] : memref<8x16xf32, #tpu.memory_space<vmem>>, vector<8x16xf32>
    %c0_1 = arith.constant 0 : index
    %c0_2 = arith.constant 0 : index
    %1 = vector.load %arg2[%c0_1, %c0_2] : memref<16x128xf32, #tpu.memory_space<vmem>>, vector<16x128xf32>
    %cst = arith.constant dense<0.000000e+00> : vector<8x128xf32>
    %2 = tpu.matmul %0, %1, %cst {dimension_numbers = #tpu.dot_dimension_numbers<[1], [0], [0], [1], [0, 0, 1, 1], [], []>} : vector<8x16xf32>, vector<16x128xf32>, vector<8x128xf32> -> vector<8x128xf32>
    %cst_3 = arith.constant 0.000000e+00 : f32
    %3 = vector.broadcast %cst_3 : f32 to vector<8x128xf32>
    %4 = arith.maximumf %2, %3 : vector<8x128xf32>
    %c0_4 = arith.constant 0 : index
    %c0_5 = arith.constant 0 : index
    %5 = vector.load %arg3[%c0_4, %c0_5] : memref<128x128xf32, #tpu.memory_space<vmem>>, vector<128x128xf32>
    %cst_6 = arith.constant dense<0.000000e+00> : vector<8x128xf32>
    %6 = tpu.matmul %4, %5, %cst_6 {dimension_numbers = #tpu.dot_dimension_numbers<[1], [0], [0], [1], [0, 0, 1, 1], [], []>} : vector<8x128xf32>, vector<128x128xf32>, vector<8x128xf32> -> vector<8x128xf32>
    %cst_7 = arith.constant 0.000000e+00 : f32
    %7 = vector.broadcast %cst_7 : f32 to vector<8x128xf32>
    %8 = arith.maximumf %6, %7 : vector<8x128xf32>
    %c0_8 = arith.constant 0 : index
    %c0_9 = arith.constant 0 : index
    %9 = vector.load %arg4[%c0_8, %c0_9] : memref<128x8xf32, #tpu.memory_space<vmem>>, vector<128x8xf32>
    %cst_10 = arith.constant dense<0.000000e+00> : vector<8x8xf32>
    %10 = tpu.matmul %8, %9, %cst_10 {dimension_numbers = #tpu.dot_dimension_numbers<[1], [0], [0], [1], [0, 0, 1, 1], [], []>} : vector<8x128xf32>, vector<128x8xf32>, vector<8x8xf32> -> vector<8x8xf32>
    %c0_11 = arith.constant 0 : index
    %c0_12 = arith.constant 0 : index
    %11 = vector.load %arg5[%c0_11, %c0_12] : memref<8x8xf32, #tpu.memory_space<vmem>>, vector<8x8xf32>
    tpu.vector_store %arg5[%c0_11, %c0_12], %10 {strides = array<i32>} : memref<8x8xf32, #tpu.memory_space<vmem>>, vector<8x8xf32>,
    return
  }
  func.func @transform_0(%arg0: i32) -> (i32, i32) {
    %c0_i32 = arith.constant 0 : i32
    %c0_i32_0 = arith.constant 0 : i32
    return %arg0, %c0_i32 : i32, i32
  }
  func.func @transform_1(%arg0: i32) -> (i32, i32) {
    %c0_i32 = arith.constant 0 : i32
    %c0_i32_0 = arith.constant 0 : i32
    %c0_i32_1 = arith.constant 0 : i32
    return %c0_i32, %c0_i32_0 : i32, i32
  }
  func.func @transform_2(%arg0: i32) -> (i32, i32) {
    %c0_i32 = arith.constant 0 : i32
    %c0_i32_0 = arith.constant 0 : i32
    %c0_i32_1 = arith.constant 0 : i32
    return %c0_i32, %c0_i32_0 : i32, i32
  }
  func.func @transform_3(%arg0: i32) -> (i32, i32) {
    %c0_i32 = arith.constant 0 : i32
    %c0_i32_0 = arith.constant 0 : i32
    %c0_i32_1 = arith.constant 0 : i32
    return %c0_i32, %c0_i32_0 : i32, i32
  }
  func.func @transform_4(%arg0: i32) -> (i32, i32) {
    %c0_i32 = arith.constant 0 : i32
    %c0_i32_0 = arith.constant 0 : i32
    return %arg0, %c0_i32 : i32, i32
  }
}

</mosaic_0001>

<llo_original>
// kernel: _forward_padded.1
$region0: #{_forward_padded.1}
  #allocation0 [shape = 'u32[]', space=smem, size = 0x4, offset = 0x4, fixed_abs, tag = 'smem constant byte address 0x4 - core index']
  #allocation1 [shape = 'u32[72,128]{1,0:T(1,128)}', space=vmem, size = 0x9000, scoped, tag = 'internal scratch']
  %s0 = inlined_call_operand.vmem [shape: f32[8,16], index: 0, kind: input, shape index: {}]
  %s1 = inlined_call_operand.vmem [shape: f32[16,128], index: 1, kind: input, shape index: {}]
  %s2 = inlined_call_operand.vmem [shape: f32[128,128], index: 2, kind: input, shape index: {}]
  %s3 = inlined_call_operand.vmem [shape: f32[128,8], index: 3, kind: input, shape index: {}]
  %s4 = inlined_call_operand.vmem [shape: f32[8,8], index: 4, kind: output, shape index: {}]
  %s5 = sld [smem:[#allocation0]]
  $region26: #{_forward_padded.1} parent=0
    _
  %s7 = ssub.s32 1, %s5
  %s8 = scalar_select 0, %s7, %s5
  // Predicated region
  $region2: #{_forward_padded.1} parent=0 // pred_check
    _
  $region3: #{_forward_padded.1} parent=0 // pred_check_branch
    %10 = sbr.rel (0) target = $region5
  $region4: #{_forward_padded.1} parent=0 // pred_region
    _
  $region5: #{_forward_padded.1} parent=0 // pred_fallthru
    _
  // Predicated region
  $region6: #{_forward_padded.1} parent=0 // pred_check
    _
  $region7: #{_forward_padded.1} parent=0 // pred_check_branch
    %12 = sbr.rel (0) target = $region9
  $region8: #{_forward_padded.1} parent=0 // pred_region
    _
  $region9: #{_forward_padded.1} parent=0 // pred_fallthru
    _
  // Predicated region
  $region10: #{_forward_padded.1} parent=0 // pred_check
    _
  $region11: #{_forward_padded.1} parent=0 // pred_check_branch
    %14 = sbr.rel (0) target = $region13
  $region12: #{_forward_padded.1} parent=0 // pred_region
    _
  $region13: #{_forward_padded.1} parent=0 // pred_fallthru
    _
  // Predicated region
  $region14: #{_forward_padded.1} parent=0 // pred_check
    _
  $region15: #{_forward_padded.1} parent=0 // pred_check_branch
    %16 = sbr.rel (0) target = $region17
  $region16: #{_forward_padded.1} parent=0 // pred_region
    _
  $region17: #{_forward_padded.1} parent=0 // pred_fallthru
    _
  %v17 = vld [vmem:[%s0] sm:$0xff]
  %v18 = vld [vmem:[%s1] sm:$0xff]
  %v19 = vld [vmem:[%s1 + $0x8] sm:$0xff]
  %vm20 = vcmask 130048
  %v22 = vsel %vm20, %v17, 0
  %24 = vmatpush.msra.mxu0 0.0
  %25 = vmatpush.msra.mxu0 0.0
  %26 = vmatpush.msra.mxu0 0.0
  %27 = vmatpush.msra.mxu0 0.0
  %28 = vmatpush.msra.mxu0 0.0
  %29 = vmatpush.msra.mxu0 0.0
  %30 = vmatpush.msra.mxu0 0.0
  %31 = vmatpush.msra.mxu0 0.0
  %32 = vmatpush.msra.mxu0 0.0
  %33 = vmatpush.msra.mxu0 0.0
  %34 = vmatpush.msra.mxu0 0.0
  %35 = vmatpush.msra.mxu0 0.0
  %36 = vmatpush.msra.mxu0 0.0
  %37 = vmatpush.msra.mxu0 0.0
  %38 = vmatpush.msra.mxu0 %v19
  %39 = vmatpush.msra.mxu0 %v18
  %40 = vmatmul.f32.gmra.mxu0 %v22
  %v41 = vpop.f32.mrf.mxu0
  %v42 = vadd.f32 0.0, %v41
  %43 = vdwg.mxu0
  %v44 = vmax.f32 %v42, 0.0
  %v45 = vld [vmem:[%s2] sm:$0xff]
  %v46 = vld [vmem:[%s2 + $0x8] sm:$0xff]
  %v47 = vld [vmem:[%s2 + $0x10] sm:$0xff]
  %v48 = vld [vmem:[%s2 + $0x18] sm:$0xff]
  %v49 = vld [vmem:[%s2 + $0x20] sm:$0xff]
  %v50 = vld [vmem:[%s2 + $0x28] sm:$0xff]
  %v51 = vld [vmem:[%s2 + $0x30] sm:$0xff]
  %v52 = vld [vmem:[%s2 + $0x38] sm:$0xff]
  %v53 = vld [vmem:[%s2 + $0x40] sm:$0xff]
  %v54 = vld [vmem:[%s2 + $0x48] sm:$0xff]
  %v55 = vld [vmem:[%s2 + $0x50] sm:$0xff]
  %v56 = vld [vmem:[%s2 + $0x58] sm:$0xff]
  %v57 = vld [vmem:[%s2 + $0x60] sm:$0xff]
  %v58 = vld [vmem:[%s2 + $0x68] sm:$0xff]
  %v59 = vld [vmem:[%s2 + $0x70] sm:$0xff]
  %v60 = vld [vmem:[%s2 + $0x78] sm:$0xff]
  %61 = vmatpush.msra.mxu0 %v60
  %62 = vmatpush.msra.mxu0 %v59
  %63 = vmatpush.msra.mxu0 %v58
  %64 = vmatpush.msra.mxu0 %v57
  %65 = vmatpush.msra.mxu0 %v56
  %66 = vmatpush.msra.mxu0 %v55
  %67 = vmatpush.msra.mxu0 %v54
  %68 = vmatpush.msra.mxu0 %v53
  %69 = vmatpush.msra.mxu0 %v52
  %70 = vmatpush.msra.mxu0 %v51
  %71 = vmatpush.msra.mxu0 %v50
  %72 = vmatpush.msra.mxu0 %v49
  %73 = vmatpush.msra.mxu0 %v48
  %74 = vmatpush.msra.mxu0 %v47
  %75 = vmatpush.msra.mxu0 %v46
  %76 = vmatpush.msra.mxu0 %v45
  %77 = vmatmul.f32.gmra.mxu0 %v44
  %v78 = vpop.f32.mrf.mxu0
  %v79 = vadd.f32 0.0, %v78
  %80 = vdwg.mxu0
  %v81 = vmax.f32 %v79, 0.0
  %v82 = vld [vmem:[%s3] sm:$0xff]
  %v83 = vld [vmem:[%s3 + $0x8] sm:$0xff]
  %v84 = vld [vmem:[%s3 + $0x10] sm:$0xff]
  %v85 = vld [vmem:[%s3 + $0x18] sm:$0xff]
  %v86 = vld [vmem:[%s3 + $0x20] sm:$0xff]
  %v87 = vld [vmem:[%s3 + $0x28] sm:$0xff]
  %v88 = vld [vmem:[%s3 + $0x30] sm:$0xff]
  %v89 = vld [vmem:[%s3 + $0x38] sm:$0xff]
  %v90 = vld [vmem:[%s3 + $0x40] sm:$0xff]
  %v91 = vld [vmem:[%s3 + $0x48] sm:$0xff]
  %v92 = vld [vmem:[%s3 + $0x50] sm:$0xff]
  %v93 = vld [vmem:[%s3 + $0x58] sm:$0xff]
  %v94 = vld [vmem:[%s3 + $0x60] sm:$0xff]
  %v95 = vld [vmem:[%s3 + $0x68] sm:$0xff]
  %v96 = vld [vmem:[%s3 + $0x70] sm:$0xff]
  %v97 = vld [vmem:[%s3 + $0x78] sm:$0xff]
  %98 = vmatpush.msra.mxu0 %v97
  %99 = vmatpush.msra.mxu0 %v96
  %100 = vmatpush.msra.mxu0 %v95
  %101 = vmatpush.msra.mxu0 %v94
  %102 = vmatpush.msra.mxu0 %v93
  %103 = vmatpush.msra.mxu0 %v92
  %104 = vmatpush.msra.mxu0 %v91
  %105 = vmatpush.msra.mxu0 %v90
  %106 = vmatpush.msra.mxu0 %v89
  %107 = vmatpush.msra.mxu0 %v88
  %108 = vmatpush.msra.mxu0 %v87
  %109 = vmatpush.msra.mxu0 %v86
  %110 = vmatpush.msra.mxu0 %v85
  %111 = vmatpush.msra.mxu0 %v84
  %112 = vmatpush.msra.mxu0 %v83
  %113 = vmatpush.msra.mxu0 %v82
  %114 = vmatmul.f32.gmra.mxu0 %v81
  %v115 = vpop.f32.mrf.mxu0
  %v116 = vadd.f32 0.0, %v115
  %117 = vdwg.mxu0
  %vm118 = vcmask 64512
  %119 = vst.msk [vmem:[%s4] sm:$0xff] %vm118, %v116
  // Predicated region
  $region18: #{_forward_padded.1} parent=0 // pred_check
    _
  $region19: #{_forward_padded.1} parent=0 // pred_check_branch
    %121 = sbr.rel (0) target = $region21
  $region20: #{_forward_padded.1} parent=0 // pred_region
    _
  $region21: #{_forward_padded.1} parent=0 // pred_fallthru
    _
  // Predicated region
  $region22: #{_forward_padded.1} parent=0 // pred_check
    _
  $region23: #{_forward_padded.1} parent=0 // pred_check_branch
    %123 = sbr.rel (0) target = $region25
  $region24: #{_forward_padded.1} parent=0 // pred_region
    _
  $region25: #{_forward_padded.1} parent=0 // pred_fallthru
    _

</llo_original>
